<compile_context>
chip_gen: v5e
topology: v5e:2x2
jax: 0.10.0
libtpu: 0.0.40
codegen_flags: <defaults>
</compile_context>

<pallas_src>
import functools

import jax
import jax.numpy as jnp
from jax.experimental import pallas as pl
from jax.experimental.pallas import tpu as pltpu


# ----------------------------------------------------------------------------- kernel

def edge_mlp_kernel(x_ref, w1_ref, b1_ref, w2_ref, b2_ref, o_ref):
    # x:  (2F, T) bf16      w1: (H, 2F) bf16     b1: (H, 1) f32
    # w2: (8, H)  f32 (rows >= 2 are zero pad)   b2: (2, 1) f32
    # o:  (2, T)  f32       (edges on lanes -> lane-dense stores)
    h = jnp.dot(w1_ref[...], x_ref[...], preferred_element_type=jnp.float32)  # (H, T)
    h = jnp.maximum(h + b1_ref[...], 0.0)                                     # bias+ReLU in f32
    s = jnp.dot(w2_ref[...], h, preferred_element_type=jnp.float32)           # (8, T)
    o_ref[...] = (s[:2, :] + b2_ref[...]).astype(o_ref.dtype)


def _edge_mlp_pallas(x, W1, b1, W2p, b2, *, tile_e):
    F2, E_pad = x.shape            # F2 = 2 * feature_dim
    H = W1.shape[0]
    grid = (pl.cdiv(E_pad, tile_e),)          # partial last block is fine (masked stores)

    # VMEM: ~tile_e * (double-buffered bf16 x + f32 h + f32 s + double-buffered out).
    per_edge = 2 * (F2 * 2) + H * 4 + 8 * 4 + 2 * 4 * 2
    weights_b = H * F2 * 2 + H * 4 + 8 * H * 4 + 2 * 4
    vmem_est = tile_e * per_edge + 4 * weights_b
    vmem_limit = int(min(max(32 << 20, 2 * vmem_est), 48 << 20))   # safe on v5e/v6e/v7x

    flops = 2 * E_pad * H * (F2 + 8)
    bytes_accessed = int(F2 * E_pad * 2 + weights_b + 2 * E_pad * 4)
    cost = pl.CostEstimate(flops=int(flops), transcendentals=0,
                           bytes_accessed=bytes_accessed)

    return pl.pallas_call(
        edge_mlp_kernel,
        out_shape=jax.ShapeDtypeStruct((2, E_pad), jnp.float32),
        grid_spec=pltpu.PrefetchScalarGridSpec(
            num_scalar_prefetch=0,
            grid=grid,
            in_specs=[
                pl.BlockSpec((F2, tile_e), lambda i: (0, i)),   # fused start|end feats (bf16)
                pl.BlockSpec((H, F2), lambda i: (0, 0)),        # W1 (resident, bf16, tiny)
                pl.BlockSpec((H, 1), lambda i: (0, 0)),         # b1
                pl.BlockSpec((8, H), lambda i: (0, 0)),         # W2 (zero-padded to 8 rows)
                pl.BlockSpec((2, 1), lambda i: (0, 0)),         # b2
            ],
            out_specs=pl.BlockSpec((2, tile_e), lambda i: (0, i)),  # lane-dense output
        ),
        compiler_params=pltpu.CompilerParams(
            dimension_semantics=("parallel",),   # megacore: shard grid steps across TCs
            vmem_limit_bytes=vmem_limit,
        ),
        cost_estimate=cost,
    )(x, W1, b1, W2p, b2)


@functools.partial(jax.jit, static_argnames=("tile_e",))
def _edge_scores_padded(mvc, idx0, idx1, W1, b1, W2, b2, *, tile_e):
    """Gather endpoint rows, build the (2F, E_pad) bf16 slab, run the MLP kernel.
    Returns scores in kernel layout: (2, E_pad) f32."""
    H = W1.shape[0]
    # Row gather on the original (N, F) layout (contiguous per-edge reads);
    # concat / bf16 cast / transpose are XLA-fused glue feeding the kernel.
    g = jnp.concatenate([jnp.take(mvc, idx0, axis=0),
                         jnp.take(mvc, idx1, axis=0)], axis=1)        # (E_pad, 2F) f32
    x = g.astype(jnp.bfloat16).T                                      # (2F, E_pad) bf16

    W1b = W1.astype(jnp.bfloat16)                                     # (H, 2F)
    b1c = b1.reshape(H, 1).astype(jnp.float32)
    W2p = jnp.zeros((8, H), jnp.float32).at[:2, :].set(W2.astype(jnp.float32))
    b2c = b2.reshape(2, 1).astype(jnp.float32)
    return _edge_mlp_pallas(x, W1b, b1c, W2p, b2c, tile_e=tile_e)


# ----------------------------------------------------------------------------- sizing

_MAX_TILE = 32768    # ~2.3 MB DMA/step at F=16 -> per-step pipeline overhead ~10%
_MIN_TILE = 2048


def _round_up(a, b):
    return ((a + b - 1) // b) * b


def _bucket_edges(num_edges):
    """Pad E to a small set of 128-aligned bucket sizes (<=~12.5% overshoot) so
    the jitted slab+kernel path does not recompile for every distinct edge count."""
    e = _round_up(max(num_edges, 1), 128)
    if e <= 1024:
        return e
    step = max(pl.next_power_of_2(e) // 8, 128)
    return _round_up(e, step)


def _choose_tile(e_pad, f2, h, vmem_budget=20 << 20):
    """128-aligned edge tile.  Big tiles amortize the ~0.35us/step pipeline
    overhead; a conservative VMEM budget keeps every generation safe (incl. v5e);
    larger graphs get an even step count (>=4) so v7x's two TCs stay balanced."""
    per_edge = 2 * (f2 * 2) + h * 4 + 8 * 4 + 2 * 4 * 2          # ~304 B/edge at F=16,H=32
    max_tile = min(_MAX_TILE, max((vmem_budget // per_edge) // 128 * 128, 128))
    min_tile = min(_MIN_TILE, max_tile)
    if e_pad <= min_tile:
        return e_pad                          # single grid step, no extra padding
    steps = max(2, -(-e_pad // max_tile))
    if e_pad >= 4 * min_tile:
        steps = max(steps, 4)
    if steps % 2:
        steps += 1                            # even split across two TensorCores
    tile = _round_up(-(-e_pad // steps), 128)
    return max(min(tile, max_tile), min_tile)


# ----------------------------------------------------------------------------- forward

def edge_scoring_forward(mvc, edge_index, slow_edge_mask, W1, b1, W2, b2,
                         tile_e=None):
    """Mirrors EdgeScoringNet.forward: gather endpoints of non-slow edges,
    concat features, fc1 + ReLU, fc2 -> edge_scores of shape [E, 2]."""
    keep = ~slow_edge_mask
    ei = edge_index[:, keep]                              # [2, E]  (concrete shapes)
    E = int(ei.shape[1])
    if E == 0:                                            # all edges masked out
        return jnp.zeros((0, 2), jnp.float32)

    e_pad = _bucket_edges(E)
    if tile_e is None:
        tile_e = _choose_tile(e_pad, 2 * int(mvc.shape[1]), int(W1.shape[0]))

    # Pad the *indices*, not the feature slab: padded edges reuse node 0 and are
    # sliced away below; decoupled from tile_e (grid has a partial last block).
    idx0 = jnp.pad(ei[0, :], (0, e_pad - E))
    idx1 = jnp.pad(ei[1, :], (0, e_pad - E))

    out_t = _edge_scores_padded(mvc, idx0, idx1, W1, b1, W2, b2, tile_e=tile_e)
    # torch .squeeze() is a no-op for [E, 2] with E > 1.
    # TODO(synk): if the downstream consumer accepts (2, E) scores, drop this
    # transpose (it is a separate ~8 B/edge read+write XLA pass).
    return out_t[:, :E].T                                  # (E, 2) f32


# ----------------------------------------------------------------------------- demo

if __name__ == "__main__":
    key = jax.random.PRNGKey(0)
    k_mvc, k_ei, k_mask, k_w1, k_b1, k_w2, k_b2 = jax.random.split(key, 7)

    # Small synthetic graph: 32 nodes, feature_dim=16, hidden_dim=32, 64 edges.
    num_nodes, feature_dim, hidden_dim, num_edges = 32, 16, 32, 64

    mvc = jax.random.normal(k_mvc, (num_nodes, feature_dim), dtype=jnp.float32)
    edge_index = jax.random.randint(k_ei, (2, num_edges), 0, num_nodes, dtype=jnp.int32)
    slow_edge_mask = jax.random.bernoulli(k_mask, 0.3, (num_edges,))

    # Deterministic parameter init (nn.Linear-style uniform bounds).
    bound1 = 1.0 / jnp.sqrt(2.0 * feature_dim)
    W1 = jax.random.uniform(k_w1, (hidden_dim, 2 * feature_dim),
                            minval=-bound1, maxval=bound1, dtype=jnp.float32)
    b1 = jax.random.uniform(k_b1, (hidden_dim,),
                            minval=-bound1, maxval=bound1, dtype=jnp.float32)
    bound2 = 1.0 / jnp.sqrt(float(hidden_dim))
    W2 = jax.random.uniform(k_w2, (2, hidden_dim),
                            minval=-bound2, maxval=bound2, dtype=jnp.float32)
    b2 = jax.random.uniform(k_b2, (2,),
                            minval=-bound2, maxval=bound2, dtype=jnp.float32)

    edge_scores = edge_scoring_forward(mvc, edge_index, slow_edge_mask,
                                       W1, b1, W2, b2)
    edge_scores = jax.block_until_ready(edge_scores)

    # --- reference checks ----------------------------------------------------
    keep = ~slow_edge_mask
    ei = edge_index[:, keep]
    combined = jnp.concatenate([mvc[ei[0, :], :], mvc[ei[1, :], :]], axis=1)

    # (A) Same math with the same bf16 quantization of the HBM-facing
    #     activations / W1 (validates the kernel math itself).
    hp = jax.lax.Precision.HIGHEST
    comb_q = combined.astype(jnp.bfloat16).astype(jnp.float32)
    W1_q = W1.astype(jnp.bfloat16).astype(jnp.float32)
    h_ref = jnp.maximum(jnp.dot(comb_q, W1_q.T, precision=hp) + b1, 0.0)
    ref_q = jnp.dot(h_ref, W2.T, precision=hp) + b2
    assert edge_scores.shape == ref_q.shape
    assert jnp.allclose(edge_scores, ref_q, atol=5e-3, rtol=5e-3), \
        float(jnp.max(jnp.abs(edge_scores - ref_q)))

    # (B) Pure f32 (PyTorch-equivalent) reference; loose bound on the bf16
    #     input-rounding error.
    ref = jnp.maximum(jnp.dot(combined, W1.T, precision=hp) + b1, 0.0)
    ref = jnp.dot(ref, W2.T, precision=hp) + b2
    assert jnp.allclose(edge_scores, ref, atol=5e-2), \
        float(jnp.max(jnp.abs(edge_scores - ref)))

    print("KERNEL_OK")
</pallas_src>

<mosaic_0001>
module attributes {stable_mosaic.version = 11 : i64} {
  func.func @edge_mlp_kernel(%arg0: i32, %arg1: memref<32x128xbf16, #tpu.memory_space<vmem>>, %arg2: memref<32x32xbf16, #tpu.memory_space<vmem>>, %arg3: memref<32x1xf32, #tpu.memory_space<vmem>>, %arg4: memref<8x32xf32, #tpu.memory_space<vmem>>, %arg5: memref<2x1xf32, #tpu.memory_space<vmem>>, %arg6: memref<2x128xf32, #tpu.memory_space<vmem>>) attributes {dimension_semantics = [#tpu.dimension_semantics<parallel>], iteration_bounds = array<i64: 1>, scalar_prefetch = 0 : i64, scratch_operands = 0 : i64, tpu.core_type = #tpu.core_type<tc>, window_params = [{transform_indices = @transform_0, window_bounds = array<i64: 32, 128>}, {pipeline_mode = #tpu.pipeline_mode<synchronous>, transform_indices = @transform_1, window_bounds = array<i64: 32, 32>}, {pipeline_mode = #tpu.pipeline_mode<synchronous>, transform_indices = @transform_2, window_bounds = array<i64: 32, 1>}, {pipeline_mode = #tpu.pipeline_mode<synchronous>, transform_indices = @transform_3, window_bounds = array<i64: 8, 32>}, {pipeline_mode = #tpu.pipeline_mode<synchronous>, transform_indices = @transform_4, window_bounds = array<i64: 2, 1>}, {transform_indices = @transform_5, window_bounds = array<i64: 2, 128>}]} {
    %c0 = arith.constant 0 : index
    %c0_0 = arith.constant 0 : index
    %0 = vector.load %arg2[%c0, %c0_0] : memref<32x32xbf16, #tpu.memory_space<vmem>>, vector<32x32xbf16>
    %c0_1 = arith.constant 0 : index
    %c0_2 = arith.constant 0 : index
    %1 = vector.load %arg1[%c0_1, %c0_2] : memref<32x128xbf16, #tpu.memory_space<vmem>>, vector<32x128xbf16>
    %cst = arith.constant dense<0.000000e+00> : vector<32x128xf32>
    %2 = tpu.matmul %0, %1, %cst {dimension_numbers = #tpu.dot_dimension_numbers<[1], [0], [0], [1], [0, 0, 1, 1], [], []>} : vector<32x32xbf16>, vector<32x128xbf16>, vector<32x128xf32> -> vector<32x128xf32>
    %c0_3 = arith.constant 0 : index
    %c0_4 = arith.constant 0 : index
    %3 = vector.load %arg3[%c0_3, %c0_4] : memref<32x1xf32, #tpu.memory_space<vmem>>, vector<32x1xf32>
    %4 = vector.broadcast %3 : vector<32x1xf32> to vector<32x128xf32>
    %5 = arith.addf %2, %4 : vector<32x128xf32>
    %cst_5 = arith.constant 0.000000e+00 : f32
    %6 = vector.broadcast %cst_5 : f32 to vector<32x128xf32>
    %7 = arith.maximumf %5, %6 : vector<32x128xf32>
    %c0_6 = arith.constant 0 : index
    %c0_7 = arith.constant 0 : index
    %8 = vector.load %arg4[%c0_6, %c0_7] : memref<8x32xf32, #tpu.memory_space<vmem>>, vector<8x32xf32>
    %cst_8 = arith.constant dense<0.000000e+00> : vector<8x128xf32>
    %9 = tpu.matmul %8, %7, %cst_8 {dimension_numbers = #tpu.dot_dimension_numbers<[1], [0], [0], [1], [0, 0, 1, 1], [], []>} : vector<8x32xf32>, vector<32x128xf32>, vector<8x128xf32> -> vector<8x128xf32>
    %10 = vector.extract_strided_slice %9 {offsets = [0, 0], sizes = [2, 128], strides = [1, 1]} : vector<8x128xf32> to vector<2x128xf32>
    %c0_9 = arith.constant 0 : index
    %c0_10 = arith.constant 0 : index
    %11 = vector.load %arg5[%c0_9, %c0_10] : memref<2x1xf32, #tpu.memory_space<vmem>>, vector<2x1xf32>
    %12 = vector.broadcast %11 : vector<2x1xf32> to vector<2x128xf32>
    %13 = arith.addf %10, %12 : vector<2x128xf32>
    %c0_11 = arith.constant 0 : index
    %c0_12 = arith.constant 0 : index
    %14 = vector.load %arg6[%c0_11, %c0_12] : memref<2x128xf32, #tpu.memory_space<vmem>>, vector<2x128xf32>
    tpu.vector_store %arg6[%c0_11, %c0_12], %13 {strides = array<i32>} : memref<2x128xf32, #tpu.memory_space<vmem>>, vector<2x128xf32>,
    return
  }
  func.func @transform_0(%arg0: i32) -> (i32, i32) {
    %c0_i32 = arith.constant 0 : i32
    %c0_i32_0 = arith.constant 0 : i32
    return %c0_i32, %arg0 : i32, i32
  }
  func.func @transform_1(%arg0: i32) -> (i32, i32) {
    %c0_i32 = arith.constant 0 : i32
    %c0_i32_0 = arith.constant 0 : i32
    %c0_i32_1 = arith.constant 0 : i32
    return %c0_i32, %c0_i32_0 : i32, i32
  }
  func.func @transform_2(%arg0: i32) -> (i32, i32) {
    %c0_i32 = arith.constant 0 : i32
    %c0_i32_0 = arith.constant 0 : i32
    %c0_i32_1 = arith.constant 0 : i32
    return %c0_i32, %c0_i32_0 : i32, i32
  }
  func.func @transform_3(%arg0: i32) -> (i32, i32) {
    %c0_i32 = arith.constant 0 : i32
    %c0_i32_0 = arith.constant 0 : i32
    %c0_i32_1 = arith.constant 0 : i32
    return %c0_i32, %c0_i32_0 : i32, i32
  }
  func.func @transform_4(%arg0: i32) -> (i32, i32) {
    %c0_i32 = arith.constant 0 : i32
    %c0_i32_0 = arith.constant 0 : i32
    %c0_i32_1 = arith.constant 0 : i32
    return %c0_i32, %c0_i32_0 : i32, i32
  }
  func.func @transform_5(%arg0: i32) -> (i32, i32) {
    %c0_i32 = arith.constant 0 : i32
    %c0_i32_0 = arith.constant 0 : i32
    return %c0_i32, %arg0 : i32, i32
  }
}

</mosaic_0001>

<llo_original>
// kernel: _edge_scores_padded.1
$region0: #{_edge_scores_padded.1}
  #allocation0 [shape = 'u32[]', space=smem, size = 0x4, offset = 0x4, fixed_abs, tag = 'smem constant byte address 0x4 - core index']
  #allocation1 [shape = 'u32[72,128]{1,0:T(1,128)}', space=vmem, size = 0x9000, scoped, tag = 'internal scratch']
  %s0 = inlined_call_operand.vmem [shape: bf16[32,128], index: 0, kind: input, shape index: {}]
  %s1 = inlined_call_operand.vmem [shape: bf16[32,32], index: 1, kind: input, shape index: {}]
  %s2 = inlined_call_operand.vmem [shape: f32[32,1], index: 2, kind: input, shape index: {}]
  %s3 = inlined_call_operand.vmem [shape: f32[8,32], index: 3, kind: input, shape index: {}]
  %s4 = inlined_call_operand.vmem [shape: f32[2,1], index: 4, kind: input, shape index: {}]
  %s5 = inlined_call_operand.hbm [shape: f32[2,128], index: 5, kind: output, shape index: {}]
  %s6 = sld [smem:[#allocation0]]
  $region30: #{_edge_scores_padded.1} parent=0
    _
  %s8 = ssub.s32 1, %s6
  %s9 = scalar_select 0, %s8, %s6
  $region1: #{_edge_scores_padded.1} parent=0
    #allocation2 [shape = 'u8[1024]{0}', space=vmem, size = 0x400, scoped, tag = 'output window, operand 0, single buffered']
    #allocation3 [shape = 's32[1]{0}', space=sflag, size = 0x4, scoped, tag = 'scoped memory for _edge_scores_padded.1']
    %10 = vsyncpa [#allocation3], 0
    // Predicated region
    $region2: #{_edge_scores_padded.1} parent=1 // pred_check
      _
    $region3: #{_edge_scores_padded.1} parent=1 // pred_check_branch
      %12 = sbr.rel (0) target = $region5
    $region4: #{_edge_scores_padded.1} parent=1 // pred_region
      _
    $region5: #{_edge_scores_padded.1} parent=1 // pred_fallthru
      _
    // Predicated region
    $region6: #{_edge_scores_padded.1} parent=1 // pred_check
      _
    $region7: #{_edge_scores_padded.1} parent=1 // pred_check_branch
      %14 = sbr.rel (0) target = $region9
    $region8: #{_edge_scores_padded.1} parent=1 // pred_region
      _
    $region9: #{_edge_scores_padded.1} parent=1 // pred_fallthru
      _
    // Predicated region
    $region10: #{_edge_scores_padded.1} parent=1 // pred_check
      _
    $region11: #{_edge_scores_padded.1} parent=1 // pred_check_branch
      %16 = sbr.rel (0) target = $region13
    $region12: #{_edge_scores_padded.1} parent=1 // pred_region
      _
    $region13: #{_edge_scores_padded.1} parent=1 // pred_fallthru
      _
    // Predicated region
    $region14: #{_edge_scores_padded.1} parent=1 // pred_check
      _
    $region15: #{_edge_scores_padded.1} parent=1 // pred_check_branch
      %18 = sbr.rel (0) target = $region17
    $region16: #{_edge_scores_padded.1} parent=1 // pred_region
      _
    $region17: #{_edge_scores_padded.1} parent=1 // pred_fallthru
      _
    // Predicated region
    $region18: #{_edge_scores_padded.1} parent=1 // pred_check
      _
    $region19: #{_edge_scores_padded.1} parent=1 // pred_check_branch
      %20 = sbr.rel (0) target = $region21
    $region20: #{_edge_scores_padded.1} parent=1 // pred_region
      _
    $region21: #{_edge_scores_padded.1} parent=1 // pred_fallthru
      _
    %v22 = vld [vmem:[%s1] sm:$0xf]
    %v23 = vld [vmem:[%s1 + $0x4] sm:$0xf]
    %v24 = vld [vmem:[%s1 + $0x8] sm:$0xf]
    %v25 = vld [vmem:[%s1 + $0xc] sm:$0xf]
    %v26 = vld [vmem:[%s0] sm:$0xf]
    %v27 = vld [vmem:[%s0 + $0x4] sm:$0xf]
    %v28 = vld [vmem:[%s0 + $0x8] sm:$0xf]
    %v29 = vld [vmem:[%s0 + $0xc] sm:$0xf]
    %v30 = vld [vmem:[%s2] sm:$0xff]
    %v31 = vld [vmem:[%s2 + $0x8] sm:$0xff]
    %v32 = vld [vmem:[%s2 + $0x10] sm:$0xff]
    %v33 = vld [vmem:[%s2 + $0x18] sm:$0xff]
    %35 = vset.pattern.permute.xlu0 0
    %36 = vperm.xlu0 %35, %v30
    %v37 = vpop.permute.xlu0 %36
    %40 = vset.pattern.permute.xlu0 0
    %41 = vperm.xlu0 %40, %v31
    %v42 = vpop.permute.xlu0 %41
    %45 = vset.pattern.permute.xlu0 0
    %46 = vperm.xlu0 %45, %v32
    %v47 = vpop.permute.xlu0 %46
    %50 = vset.pattern.permute.xlu0 0
    %51 = vperm.xlu0 %50, %v33
    %v52 = vpop.permute.xlu0 %51
    %v58 = vunpack.c.l.b16 %v22
    %v59 = vunpack.c.l.b16 %v23
    %v60 = vunpack.c.l.b16 %v24
    %v61 = vunpack.c.l.b16 %v25
    %v62 = vpack.c.b16 %v59, %v58
    %v63 = vpack.c.b16 %v61, %v60
    %v68 = vunpack.c.l.b16 %v26
    %v69 = vunpack.c.l.b16 %v27
    %v70 = vunpack.c.l.b16 %v28
    %v71 = vunpack.c.l.b16 %v29
    %v72 = vpack.c.b16 %v69, %v68
    %v73 = vpack.c.b16 %v71, %v70
    %vm76 = vcmask 261120
    %v78 = vsel %vm76, %v62, 0
    %v81 = vsel %vm76, %v63, 0
    %83 = vmatpush.bf16.msra.mxu0 0
    %84 = vmatpush.bf16.msra.mxu0 0
    %85 = vmatpush.bf16.msra.mxu0 0
    %86 = vmatpush.bf16.msra.mxu0 0
    %87 = vmatpush.bf16.msra.mxu0 0
    %88 = vmatpush.bf16.msra.mxu0 0
    %89 = vmatpush.bf16.msra.mxu0 %v73
    %90 = vmatpush.bf16.msra.mxu0 %v72
    %91 = vmatmul.bf16.gmra.mxu0 %v78
    %v92 = vpop.f32.mrf.mxu0
    %v93 = vadd.f32 %v37, %v92
    %v94 = vpop.f32.mrf.mxu0
    %v95 = vadd.f32 %v42, %v94
    %96 = vmatmul.bf16.gmra.mxu0 %v81
    %v97 = vpop.f32.mrf.mxu0
    %v98 = vadd.f32 %v47, %v97
    %v99 = vpop.f32.mrf.mxu0
    %v100 = vadd.f32 %v52, %v99
    %101 = vdwg.mxu0
    %v102 = vmax.f32 %v93, 0.0
    %v103 = vmax.f32 %v95, 0.0
    %v104 = vmax.f32 %v98, 0.0
    %v105 = vmax.f32 %v100, 0.0
    %v106 = vld [vmem:[%s3] sm:$0xff]
    %v108 = vsel %vm76, %v106, 0
    %110 = vmatpush.msra.mxu0 0.0
    %111 = vmatpush.msra.mxu0 0.0
    %112 = vmatpush.msra.mxu0 0.0
    %113 = vmatpush.msra.mxu0 0.0
    %114 = vmatpush.msra.mxu0 0.0
    %115 = vmatpush.msra.mxu0 0.0
    %116 = vmatpush.msra.mxu0 0.0
    %117 = vmatpush.msra.mxu0 0.0
    %118 = vmatpush.msra.mxu0 0.0
    %119 = vmatpush.msra.mxu0 0.0
    %120 = vmatpush.msra.mxu0 0.0
    %121 = vmatpush.msra.mxu0 0.0
    %122 = vmatpush.msra.mxu0 %v105
    %123 = vmatpush.msra.mxu0 %v104
    %124 = vmatpush.msra.mxu0 %v103
    %125 = vmatpush.msra.mxu0 %v102
    %126 = vmatmul.f32.gmra.mxu0 %v108
    %v127 = vpop.f32.mrf.mxu0
    %v128 = vadd.f32 0.0, %v127
    %129 = vdwg.mxu0
    %v130 = vld [vmem:[%s4] sm:$0x3]
    %132 = vset.pattern.permute.xlu0 0
    %133 = vperm.xlu0 %132, %v130
    %v134 = vpop.permute.xlu0 %133
    %v136 = vadd.f32 %v128, %v134
    %137 = vst [vmem:[#allocation2] sm:$0x3] %v136
    // Predicated region
    $region22: #{_edge_scores_padded.1} parent=1 // pred_check
      _
    $region23: #{_edge_scores_padded.1} parent=1 // pred_check_branch
      %139 = sbr.rel (0) target = $region25
    $region24: #{_edge_scores_padded.1} parent=1 // pred_region
      %141 = vsyncadd [#allocation3], 0
      %s143 = sshll.u32 [#allocation2], 4
      %s144 = int_to_ptr.vmem [resolvable:$true] %s143
      %s145 = sshll.u32 %s5, 4
      %s146 = int_to_ptr.hbm [resolvable:$true] %s145
      %148 = dma.vmem_to_hbm [thread:$0]  %s144, 32, %s146, [#allocation3]
    $region25: #{_edge_scores_padded.1} parent=1 // pred_fallthru
      _
    // Predicated region
    $region26: #{_edge_scores_padded.1} parent=1 // pred_check
      _
    $region27: #{_edge_scores_padded.1} parent=1 // pred_check_branch
      %150 = sbr.rel (0) target = $region29
    $region28: #{_edge_scores_padded.1} parent=1 // pred_region
      %152 = dma.done [#allocation3], 32
    $region29: #{_edge_scores_padded.1} parent=1 // pred_fallthru
      _
    %153 = vsyncpa [#allocation3], 1

</llo_original>
